<compile_context>
chip_gen: v5e
topology: v5e:2x2
jax: 0.10.0
libtpu: 0.0.40
codegen_flags: <defaults>
</compile_context>

<pallas_src>
import jax
import jax.numpy as jnp
from jax.experimental import pallas as pl
from jax.experimental.pallas import tpu as pltpu


def _gamma_kernel(ig_ref, x_ref, o_ref):
    # ig_ref: VMEM (TR, 1)   f32 per-row exponent (1/gamma of that row's channel)
    # x_ref : VMEM (TR, LANES) lane-dense pixel tile
    # o_ref : VMEM (TR, LANES) output tile
    x = x_ref[...].astype(jnp.float32)
    # x ** (1/gamma)  -> exp((1/gamma) * log(x)) on the EUP, lane-broadcast of ig
    o_ref[...] = jnp.power(x, ig_ref[...]).astype(o_ref.dtype)


def _tanh_range(x, left, right):
    return (jnp.tanh(x) * 0.5 + 0.5) * (right - left) + left


def _round_up(x, m):
    return ((x + m - 1) // m) * m


def simple_rggb_gamma(x, bias, gamma_range=(1.0, 4.0)):
    """x: (B, C, H, W), bias: (1, C). Returns x ** (1/gamma_c), gamma_c from bias."""
    B, C, H, W = x.shape
    ia = _tanh_range(bias.astype(jnp.float32), gamma_range[0], gamma_range[1])  # (1, C)
    inv_gamma = (1.0 / ia).reshape(C).astype(jnp.float32)                        # (C,)

    # ---- lane-dense retiling: (B, C, H*W) -> (ROWS, LANES) ----
    HW = H * W
    LANES = min(512, _round_up(HW, 128))        # lane width: multiple of 128, <= 512
    hw_pad = _round_up(HW, LANES)
    R = hw_pad // LANES                         # rows per (b, c) image plane
    ROWS = B * C * R

    TILE_BYTES = 2 * 1024 * 1024                # ~2 MiB f32 tiles
    max_tr = max(8, (TILE_BYTES // (LANES * 4)) // 8 * 8)
    if ROWS <= max_tr:
        TR = _round_up(ROWS, 8)                 # single tile covers everything
        ROWS_pad = TR
    else:
        TR = max_tr                             # multiple of 8
        ROWS_pad = _round_up(ROWS, TR)

    # pad with 1.0: 1 ** anything == 1 (no NaN/inf); stripped below
    x_flat = x.reshape(B, C, HW)
    if hw_pad != HW:
        x_flat = jnp.pad(x_flat, ((0, 0), (0, 0), (0, hw_pad - HW)),
                         constant_values=1.0)
    x_rows = x_flat.reshape(ROWS, LANES)
    if ROWS_pad != ROWS:
        x_rows = jnp.pad(x_rows, ((0, ROWS_pad - ROWS), (0, 0)),
                         constant_values=1.0)

    # per-row exponent column: row index = ((b*C + c) * R + r) -> inv_gamma[c]
    ig_rows = jnp.repeat(jnp.tile(inv_gamma, B), R)            # (ROWS,)
    if ROWS_pad != ROWS:
        ig_rows = jnp.pad(ig_rows, (0, ROWS_pad - ROWS), constant_values=1.0)
    ig_rows = ig_rows.reshape(ROWS_pad, 1).astype(jnp.float32)  # (ROWS_pad, 1)

    grid = (ROWS_pad // TR,)

    out_rows = pl.pallas_call(
        _gamma_kernel,
        out_shape=jax.ShapeDtypeStruct((ROWS_pad, LANES), x.dtype),
        grid_spec=pltpu.PrefetchScalarGridSpec(
            num_scalar_prefetch=0,
            grid=grid,
            in_specs=[
                # tiny per-row exponent column (negligible bandwidth)
                pl.BlockSpec((TR, 1), lambda r: (r, 0)),
                # lane-dense pixel tile
                pl.BlockSpec((TR, LANES), lambda r: (r, 0)),
            ],
            out_specs=pl.BlockSpec((TR, LANES), lambda r: (r, 0)),
        ),
        compiler_params=pltpu.CompilerParams(
            # all grid points independent -> shard across both TCs on v7x
            dimension_semantics=("parallel",),
        ),
    )(ig_rows, x_rows)

    out = out_rows[:ROWS].reshape(B, C, hw_pad)
    if hw_pad != HW:
        out = out[:, :, :HW]
    return out.reshape(B, C, H, W)


if __name__ == "__main__":
    key = jax.random.PRNGKey(0)

    B, C, H, W = 2, 4, 16, 16
    # Image-like non-negative inputs (RGGB raw values in [0, 1)).
    x = jax.random.uniform(key, (B, C, H, W), dtype=jnp.float32)

    # Deterministic parameter init, same as the module __init__: zeros of shape (1, 4).
    bias = jnp.zeros((1, C), dtype=jnp.float32)

    out = simple_rggb_gamma(x, bias)
    out = jax.block_until_ready(out)

    # Pure-JAX reference check (same math as the PyTorch forward).
    ia_ref = _tanh_range(bias, 1.0, 4.0)[..., None, None]   # (1, C, 1, 1)
    ref = x ** (1.0 / ia_ref)
    assert out.shape == (B, C, H, W)
    assert jnp.allclose(out, ref, atol=1e-5, rtol=1e-5), "mismatch vs reference"

    print("KERNEL_OK")
</pallas_src>

<mosaic_0001>
module attributes {stable_mosaic.version = 11 : i64} {
  func.func @_gamma_kernel(%arg0: i32, %arg1: memref<8x1xf32, #tpu.memory_space<vmem>>, %arg2: memref<8x256xf32, #tpu.memory_space<vmem>>, %arg3: memref<8x256xf32, #tpu.memory_space<vmem>>) attributes {dimension_semantics = [#tpu.dimension_semantics<parallel>], iteration_bounds = array<i64: 1>, scalar_prefetch = 0 : i64, scratch_operands = 0 : i64, tpu.core_type = #tpu.core_type<tc>, window_params = [{transform_indices = @transform_0, window_bounds = array<i64: 8, 1>}, {transform_indices = @transform_1, window_bounds = array<i64: 8, 256>}, {transform_indices = @transform_2, window_bounds = array<i64: 8, 256>}]} {
    %c0 = arith.constant 0 : index
    %c0_0 = arith.constant 0 : index
    %0 = vector.load %arg2[%c0, %c0_0] : memref<8x256xf32, #tpu.memory_space<vmem>>, vector<8x256xf32>
    %c0_1 = arith.constant 0 : index
    %c0_2 = arith.constant 0 : index
    %1 = vector.load %arg1[%c0_1, %c0_2] : memref<8x1xf32, #tpu.memory_space<vmem>>, vector<8x1xf32>
    %2 = vector.broadcast %1 : vector<8x1xf32> to vector<8x256xf32>
    %3 = math.powf %0, %2 : vector<8x256xf32>
    %c0_3 = arith.constant 0 : index
    %c0_4 = arith.constant 0 : index
    %4 = vector.load %arg3[%c0_3, %c0_4] : memref<8x256xf32, #tpu.memory_space<vmem>>, vector<8x256xf32>
    tpu.vector_store %arg3[%c0_3, %c0_4], %3 {strides = array<i32>} : memref<8x256xf32, #tpu.memory_space<vmem>>, vector<8x256xf32>,
    return
  }
  func.func @transform_0(%arg0: i32) -> (i32, i32) {
    %c0_i32 = arith.constant 0 : i32
    %c0_i32_0 = arith.constant 0 : i32
    return %arg0, %c0_i32 : i32, i32
  }
  func.func @transform_1(%arg0: i32) -> (i32, i32) {
    %c0_i32 = arith.constant 0 : i32
    %c0_i32_0 = arith.constant 0 : i32
    return %arg0, %c0_i32 : i32, i32
  }
  func.func @transform_2(%arg0: i32) -> (i32, i32) {
    %c0_i32 = arith.constant 0 : i32
    %c0_i32_0 = arith.constant 0 : i32
    return %arg0, %c0_i32 : i32, i32
  }
}

</mosaic_0001>

<llo_original>
// kernel: tpu_custom_call.1
$region0: #{tpu_custom_call.1}
  #allocation0 [shape = 'u32[]', space=smem, size = 0x4, offset = 0x4, fixed_abs, tag = 'smem constant byte address 0x4 - core index']
  #allocation1 [shape = 'u32[72,128]{1,0:T(1,128)}', space=vmem, size = 0x9000, scoped, tag = 'internal scratch']
  %s0 = inlined_call_operand.vmem [shape: f32[8,1], index: 0, kind: input, shape index: {}]
  %s1 = inlined_call_operand.hbm [shape: f32[8,256], index: 1, kind: input, shape index: {}]
  %s2 = inlined_call_operand.hbm [shape: f32[8,256], index: 2, kind: output, shape index: {}]
  %s3 = sld [smem:[#allocation0]]
  $region22: #{tpu_custom_call.1} parent=0
    _
  %s5 = ssub.s32 1, %s3
  %s6 = scalar_select 0, %s5, %s3
  $region1: #{tpu_custom_call.1} parent=0
    #allocation2 [shape = 'u8[8192]{0}', space=vmem, size = 0x2000, scoped, tag = 'input window, operand 1, single buffered']
    #allocation3 [shape = 's32[1]{0}', space=sflag, size = 0x4, scoped, tag = 'scoped memory for tpu_custom_call.1']
    #allocation4 [shape = 's32[1]{0}', space=sflag, size = 0x4, scoped, tag = 'scoped memory for tpu_custom_call.1']
    #allocation5 [shape = 'u8[8192]{0}', space=vmem, size = 0x2000, scoped, tag = 'output window, operand 0, single buffered']
    %7 = vsyncpa [#allocation3], 0
    %8 = vsyncpa [#allocation4], 0
    // Predicated region
    $region2: #{tpu_custom_call.1} parent=1 // pred_check
      _
    $region3: #{tpu_custom_call.1} parent=1 // pred_check_branch
      %10 = sbr.rel (0) target = $region5
    $region4: #{tpu_custom_call.1} parent=1 // pred_region
      _
    $region5: #{tpu_custom_call.1} parent=1 // pred_fallthru
      _
    // Predicated region
    $region6: #{tpu_custom_call.1} parent=1 // pred_check
      _
    $region7: #{tpu_custom_call.1} parent=1 // pred_check_branch
      %12 = sbr.rel (0) target = $region9
    $region8: #{tpu_custom_call.1} parent=1 // pred_region
      %14 = vsyncadd [#allocation3], 0
      %s16 = sshll.u32 %s1, 4
      %s17 = int_to_ptr.hbm [resolvable:$true] %s16
      %s18 = sshll.u32 [#allocation2], 4
      %s19 = int_to_ptr.vmem [resolvable:$true] %s18
      %21 = dma.hbm_to_vmem [thread:$0]  %s17, 256, %s19, [#allocation3]
    $region9: #{tpu_custom_call.1} parent=1 // pred_fallthru
      _
    // Predicated region
    $region10: #{tpu_custom_call.1} parent=1 // pred_check
      _
    $region11: #{tpu_custom_call.1} parent=1 // pred_check_branch
      %23 = sbr.rel (0) target = $region13
    $region12: #{tpu_custom_call.1} parent=1 // pred_region
      %25 = dma.done [#allocation3], 256
    $region13: #{tpu_custom_call.1} parent=1 // pred_fallthru
      _
    %v26 = vld [vmem:[#allocation2] sm:$0xff]
    %v27 = vld [vmem:[#allocation2 + $0x8] sm:$0xff]
    %v28 = vld [vmem:[%s0] sm:$0xff]
    %30 = vset.pattern.permute.xlu0 0
    %31 = vperm.xlu0 %30, %v28
    %v32 = vpop.permute.xlu0 %31
    %v34 = vpow.f32 %v26, %v32
    %v35 = vpow.f32 %v27, %v32
    %36 = vst [vmem:[#allocation5] sm:$0xff] %v34
    %37 = vst [vmem:[#allocation5 + $0x8] sm:$0xff] %v35
    // Predicated region
    $region14: #{tpu_custom_call.1} parent=1 // pred_check
      _
    $region15: #{tpu_custom_call.1} parent=1 // pred_check_branch
      %39 = sbr.rel (0) target = $region17
    $region16: #{tpu_custom_call.1} parent=1 // pred_region
      %41 = vsyncadd [#allocation4], 0
      %s43 = sshll.u32 [#allocation5], 4
      %s44 = int_to_ptr.vmem [resolvable:$true] %s43
      %s45 = sshll.u32 %s2, 4
      %s46 = int_to_ptr.hbm [resolvable:$true] %s45
      %48 = dma.vmem_to_hbm [thread:$0]  %s44, 256, %s46, [#allocation4]
    $region17: #{tpu_custom_call.1} parent=1 // pred_fallthru
      _
    // Predicated region
    $region18: #{tpu_custom_call.1} parent=1 // pred_check
      _
    $region19: #{tpu_custom_call.1} parent=1 // pred_check_branch
      %50 = sbr.rel (0) target = $region21
    $region20: #{tpu_custom_call.1} parent=1 // pred_region
      %52 = dma.done [#allocation4], 256
    $region21: #{tpu_custom_call.1} parent=1 // pred_fallthru
      _
    %53 = vsyncpa [#allocation3], 1
    %54 = vsyncpa [#allocation4], 1

</llo_original>
